<compile_context>
chip_gen: v6e
topology: v6e:2x2x1
jax: 0.10.0
libtpu: 0.0.40
codegen_flags: <defaults>
</compile_context>

<pallas_src>
import functools

import jax
import jax.numpy as jnp
from jax.experimental import pallas as pl
from jax.experimental.pallas import tpu as pltpu

EPS = 1e-5  # nn.BatchNorm2d(eps=1e-05)


def _fused_conv_bn_relu_kernel(p_ref, w_ref, gamma_ref, beta_ref, o_ref, *,
                               valid_cols, apply_bn, apply_relu):
    """im2col conv (one MXU contraction) + train-mode BN + ReLU, fully fused.

    p_ref:      (K, Lpad)    bf16 im2col patches, K = KH*KW*Cin,
                             lanes = N*Ho*Wo zero-padded to a multiple of 128.
    w_ref:      (Cout, K)    bf16 folded conv weight.
    gamma/beta: (Cout, 1)    f32 BatchNorm affine parameters.
    o_ref:      (Cout, Lpad) f32 output (padded lanes are garbage; wrapper drops them).
    """
    lpad = p_ref.shape[1]

    # Single bf16 MXU contraction over all taps and all batch samples,
    # accumulated in f32.
    acc = jnp.dot(w_ref[...], p_ref[...],
                  preferred_element_type=jnp.float32)            # (Cout, Lpad)

    if apply_bn:
        inv_cnt = jnp.float32(1.0 / valid_cols)
        # Padded lane columns of p_ref are exactly zero -> acc is exactly zero
        # there, so the plain row-sum equals the sum over valid columns.
        mean = jnp.sum(acc, axis=1, keepdims=True) * inv_cnt     # (Cout, 1)
        centered = acc - mean
        if lpad > valid_cols:   # mask only needed for the centered term
            lane = jax.lax.broadcasted_iota(jnp.int32, (1, lpad), 1)
            centered = centered * (lane < valid_cols).astype(jnp.float32)
        var = jnp.sum(centered * centered, axis=1, keepdims=True) * inv_cnt
        scale = gamma_ref[...] * jax.lax.rsqrt(var + EPS)        # (Cout, 1)
        shift = beta_ref[...] - mean * scale
        acc = acc * scale + shift

    if apply_relu:
        acc = jnp.maximum(acc, 0.0)
    o_ref[...] = acc.astype(o_ref.dtype)


def basic_conv_forward(x_nchw, w_oihw, gamma, beta, *, padding=1,
                       relu=True, bn=True):
    """Pallas BasicConv.forward (stride=1, dilation=1, groups=1, bias=False)."""
    # TODO(synk): stride!=1 / dilation!=1 / groups!=1 and the BatchNorm
    # running_mean/running_var momentum update (training-only side effect, and the
    # eval-mode running-stats path) are not modeled.
    N, Cin, H, W = x_nchw.shape
    Cout, _, KH, KW = w_oihw.shape
    Hp, Wp = H + 2 * padding, W + 2 * padding
    Ho, Wo = Hp - KH + 1, Wp - KW + 1
    K = KH * KW * Cin                    # folded contraction length
    L = N * Ho * Wo                      # batch folded onto the lane axis
    Lpad = ((L + 127) // 128) * 128      # lane-dense output

    # ---- wrapper glue (layout only): im2col-lite + weight fold, cast to bf16 ----
    xp = jnp.pad(x_nchw, ((0, 0), (0, 0), (padding, padding), (padding, padding)))
    taps = [xp[:, :, kh:kh + Ho, kw:kw + Wo]          # (N, Cin, Ho, Wo) per tap
            for kh in range(KH) for kw in range(KW)]
    patches = jnp.stack(taps, axis=0)                 # (KH*KW, N, Cin, Ho, Wo)
    patches = jnp.transpose(patches, (0, 2, 1, 3, 4)).reshape(K, L)
    patches = jnp.pad(patches, ((0, 0), (0, Lpad - L))).astype(jnp.bfloat16)
    w_fold = jnp.transpose(w_oihw, (0, 2, 3, 1)).reshape(Cout, K).astype(jnp.bfloat16)

    apply_bn = bn and (N != 1)           # mirror the PyTorch guard `x.shape[0] != 1`

    kernel = functools.partial(_fused_conv_bn_relu_kernel,
                               valid_cols=L, apply_bn=apply_bn, apply_relu=relu)
    cost = pl.CostEstimate(
        flops=2 * Cout * K * Lpad + (6 * Cout * Lpad if apply_bn else Cout * Lpad),
        transcendentals=Cout if apply_bn else 0,
        bytes_accessed=2 * (K * Lpad + Cout * K) + 4 * (Cout * Lpad + 2 * Cout))

    out_flat = pl.pallas_call(
        kernel,
        out_shape=jax.ShapeDtypeStruct((Cout, Lpad), jnp.float32),
        grid_spec=pltpu.PrefetchScalarGridSpec(
            num_scalar_prefetch=0,
            grid=(1,),                                  # whole problem in one step
            in_specs=[pl.BlockSpec((K, Lpad), lambda i: (0, 0)),
                      pl.BlockSpec((Cout, K), lambda i: (0, 0)),
                      pl.BlockSpec((Cout, 1), lambda i: (0, 0)),
                      pl.BlockSpec((Cout, 1), lambda i: (0, 0))],
            out_specs=pl.BlockSpec((Cout, Lpad), lambda i: (0, 0))),
        compiler_params=pltpu.CompilerParams(
            dimension_semantics=("arbitrary",),
            vmem_limit_bytes=16 * 1024 * 1024),
        cost_estimate=cost,
    )(patches, w_fold,
      gamma.reshape(Cout, 1).astype(jnp.float32),
      beta.reshape(Cout, 1).astype(jnp.float32))

    # Wrapper glue: drop the lane padding and recover NCHW.
    out = out_flat[:, :L].reshape(Cout, N, Ho, Wo)
    return jnp.transpose(out, (1, 0, 2, 3))


def _reference_forward(x_nchw, w_oihw, gamma, beta, *, padding=1,
                       relu=True, bn=True):
    """Pure-JAX reference matching the PyTorch module semantics.

    Uses bf16 conv operands with f32 accumulation to match the kernel's MXU
    precision (per review: lower the reference precision instead of running
    the kernel at Precision.HIGHEST).
    """
    y = jax.lax.conv_general_dilated(
        x_nchw.astype(jnp.bfloat16), w_oihw.astype(jnp.bfloat16),
        window_strides=(1, 1),
        padding=[(padding, padding), (padding, padding)],
        dimension_numbers=("NCHW", "OIHW", "NCHW"),
        preferred_element_type=jnp.float32)
    if bn and y.shape[0] != 1:
        mean = jnp.mean(y, axis=(0, 2, 3), keepdims=True)
        var = jnp.mean((y - mean) ** 2, axis=(0, 2, 3), keepdims=True)
        y = (y - mean) * jax.lax.rsqrt(var + EPS)
        y = y * gamma.reshape(1, -1, 1, 1) + beta.reshape(1, -1, 1, 1)
    if relu:
        y = jnp.maximum(y, 0.0)
    return y


if __name__ == "__main__":
    # BasicConv(in_planes=4, out_planes=8, kernel_size=3, stride=1, padding=1)
    N, Cin, H, W = 2, 4, 16, 16
    Cout, KH, KW = 8, 3, 3
    padding = 1

    key = jax.random.PRNGKey(0)
    kx, kw_key = jax.random.split(key)
    x = jax.random.normal(kx, (N, Cin, H, W), dtype=jnp.float32)
    # Conv2d weight (bias=False); deterministic synthetic init.
    w = 0.1 * jax.random.normal(kw_key, (Cout, Cin, KH, KW), dtype=jnp.float32)
    # BatchNorm2d(affine=True) default init: weight=1, bias=0.
    gamma = jnp.ones((Cout,), dtype=jnp.float32)
    beta = jnp.zeros((Cout,), dtype=jnp.float32)

    out = basic_conv_forward(x, w, gamma, beta, padding=padding, relu=True, bn=True)
    out = jax.block_until_ready(out)

    ref = _reference_forward(x, w, gamma, beta, padding=padding, relu=True, bn=True)
    if not jnp.allclose(out, ref, atol=2e-2, rtol=2e-2):
        max_err = float(jnp.max(jnp.abs(out - ref)))
        raise AssertionError(
            f"Pallas BasicConv does not match reference (max abs err {max_err})")

    print("KERNEL_OK")
</pallas_src>

<mosaic_0001>
module attributes {stable_mosaic.version = 11 : i64} {
  func.func @_fused_conv_bn_relu_kernel(%arg0: i32, %arg1: memref<36x512xbf16, #tpu.memory_space<vmem>>, %arg2: memref<8x36xbf16, #tpu.memory_space<vmem>>, %arg3: memref<8x1xf32, #tpu.memory_space<vmem>>, %arg4: memref<8x1xf32, #tpu.memory_space<vmem>>, %arg5: memref<8x512xf32, #tpu.memory_space<vmem>>) attributes {dimension_semantics = [#tpu.dimension_semantics<arbitrary>], iteration_bounds = array<i64: 1>, scalar_prefetch = 0 : i64, scratch_operands = 0 : i64, tpu.core_type = #tpu.core_type<tc>, window_params = [{pipeline_mode = #tpu.pipeline_mode<synchronous>, transform_indices = @transform_0, window_bounds = array<i64: 36, 512>}, {pipeline_mode = #tpu.pipeline_mode<synchronous>, transform_indices = @transform_1, window_bounds = array<i64: 8, 36>}, {pipeline_mode = #tpu.pipeline_mode<synchronous>, transform_indices = @transform_2, window_bounds = array<i64: 8, 1>}, {pipeline_mode = #tpu.pipeline_mode<synchronous>, transform_indices = @transform_3, window_bounds = array<i64: 8, 1>}, {pipeline_mode = #tpu.pipeline_mode<synchronous>, transform_indices = @transform_4, window_bounds = array<i64: 8, 512>}]} {
    %c0 = arith.constant 0 : index
    %c0_0 = arith.constant 0 : index
    %0 = vector.load %arg2[%c0, %c0_0] : memref<8x36xbf16, #tpu.memory_space<vmem>>, vector<8x36xbf16>
    %c0_1 = arith.constant 0 : index
    %c0_2 = arith.constant 0 : index
    %1 = vector.load %arg1[%c0_1, %c0_2] : memref<36x512xbf16, #tpu.memory_space<vmem>>, vector<36x512xbf16>
    %cst = arith.constant dense<0.000000e+00> : vector<8x512xf32>
    %2 = tpu.matmul %0, %1, %cst {dimension_numbers = #tpu.dot_dimension_numbers<[1], [0], [0], [1], [0, 0, 1, 1], [], []>} : vector<8x36xbf16>, vector<36x512xbf16>, vector<8x512xf32> -> vector<8x512xf32>
    %cst_3 = arith.constant dense<0.000000e+00> : vector<8xf32>
    %3 = vector.multi_reduction <add>, %2, %cst_3 [1] : vector<8x512xf32> to vector<8xf32>
    %4 = vector.shape_cast %3 : vector<8xf32> to vector<8x1xf32>
    %cst_4 = arith.constant 0.001953125 : f32
    %5 = vector.broadcast %cst_4 : f32 to vector<8x1xf32>
    %6 = arith.mulf %4, %5 : vector<8x1xf32>
    %7 = vector.broadcast %6 : vector<8x1xf32> to vector<8x512xf32>
    %8 = arith.subf %2, %7 : vector<8x512xf32>
    %9 = arith.mulf %8, %8 : vector<8x512xf32>
    %cst_5 = arith.constant dense<0.000000e+00> : vector<8xf32>
    %10 = vector.multi_reduction <add>, %9, %cst_5 [1] : vector<8x512xf32> to vector<8xf32>
    %11 = vector.shape_cast %10 : vector<8xf32> to vector<8x1xf32>
    %cst_6 = arith.constant 0.001953125 : f32
    %12 = vector.broadcast %cst_6 : f32 to vector<8x1xf32>
    %13 = arith.mulf %11, %12 : vector<8x1xf32>
    %c0_7 = arith.constant 0 : index
    %c0_8 = arith.constant 0 : index
    %14 = vector.load %arg3[%c0_7, %c0_8] : memref<8x1xf32, #tpu.memory_space<vmem>>, vector<8x1xf32>
    %cst_9 = arith.constant 9.99999974E-6 : f32
    %15 = vector.broadcast %cst_9 : f32 to vector<8x1xf32>
    %16 = arith.addf %13, %15 : vector<8x1xf32>
    %17 = math.rsqrt %16 : vector<8x1xf32>
    %18 = arith.mulf %14, %17 : vector<8x1xf32>
    %c0_10 = arith.constant 0 : index
    %c0_11 = arith.constant 0 : index
    %19 = vector.load %arg4[%c0_10, %c0_11] : memref<8x1xf32, #tpu.memory_space<vmem>>, vector<8x1xf32>
    %20 = arith.mulf %6, %18 : vector<8x1xf32>
    %21 = arith.subf %19, %20 : vector<8x1xf32>
    %22 = vector.broadcast %18 : vector<8x1xf32> to vector<8x512xf32>
    %23 = arith.mulf %2, %22 : vector<8x512xf32>
    %24 = vector.broadcast %21 : vector<8x1xf32> to vector<8x512xf32>
    %25 = arith.addf %23, %24 : vector<8x512xf32>
    %cst_12 = arith.constant 0.000000e+00 : f32
    %26 = vector.broadcast %cst_12 : f32 to vector<8x512xf32>
    %27 = arith.maximumf %25, %26 : vector<8x512xf32>
    %c0_13 = arith.constant 0 : index
    %c0_14 = arith.constant 0 : index
    %28 = vector.load %arg5[%c0_13, %c0_14] : memref<8x512xf32, #tpu.memory_space<vmem>>, vector<8x512xf32>
    tpu.vector_store %arg5[%c0_13, %c0_14], %27 {strides = array<i32>} : memref<8x512xf32, #tpu.memory_space<vmem>>, vector<8x512xf32>,
    return
  }
  func.func @transform_0(%arg0: i32) -> (i32, i32) {
    %c0_i32 = arith.constant 0 : i32
    %c0_i32_0 = arith.constant 0 : i32
    %c0_i32_1 = arith.constant 0 : i32
    return %c0_i32, %c0_i32_0 : i32, i32
  }
  func.func @transform_1(%arg0: i32) -> (i32, i32) {
    %c0_i32 = arith.constant 0 : i32
    %c0_i32_0 = arith.constant 0 : i32
    %c0_i32_1 = arith.constant 0 : i32
    return %c0_i32, %c0_i32_0 : i32, i32
  }
  func.func @transform_2(%arg0: i32) -> (i32, i32) {
    %c0_i32 = arith.constant 0 : i32
    %c0_i32_0 = arith.constant 0 : i32
    %c0_i32_1 = arith.constant 0 : i32
    return %c0_i32, %c0_i32_0 : i32, i32
  }
  func.func @transform_3(%arg0: i32) -> (i32, i32) {
    %c0_i32 = arith.constant 0 : i32
    %c0_i32_0 = arith.constant 0 : i32
    %c0_i32_1 = arith.constant 0 : i32
    return %c0_i32, %c0_i32_0 : i32, i32
  }
  func.func @transform_4(%arg0: i32) -> (i32, i32) {
    %c0_i32 = arith.constant 0 : i32
    %c0_i32_0 = arith.constant 0 : i32
    %c0_i32_1 = arith.constant 0 : i32
    return %c0_i32, %c0_i32_0 : i32, i32
  }
}

</mosaic_0001>

<llo_original>
// kernel: tpu_custom_call.1
$region0: #{tpu_custom_call.1}
  #allocation0 [shape = 'u32[]', space=smem, size = 0x4, offset = 0x4, fixed_abs, tag = 'smem constant byte address 0x4 - core index']
  #allocation1 [shape = 'u32[144,128]{1,0:T(1,128)}', space=vmem, size = 0x12000, scoped, tag = 'internal scratch']
  %s0 = inlined_call_operand.hbm [shape: bf16[36,512], index: 0, kind: input, shape index: {}]
  %s1 = inlined_call_operand.vmem [shape: bf16[8,36], index: 1, kind: input, shape index: {}]
  %s2 = inlined_call_operand.vmem [shape: f32[8,1], index: 2, kind: input, shape index: {}]
  %s3 = inlined_call_operand.vmem [shape: f32[8,1], index: 3, kind: input, shape index: {}]
  %s4 = inlined_call_operand.hbm [shape: f32[8,512], index: 4, kind: output, shape index: {}]
  %s5 = sld [smem:[#allocation0]]
  $region30: #{tpu_custom_call.1} parent=0
    _
  %s7 = ssub.s32 1, %s5
  %s8 = scalar_select 0, %s7, %s5
  $region1: #{tpu_custom_call.1} parent=0
    #allocation2 [shape = 'u8[40960]{0}', space=vmem, size = 0xa000, scoped, tag = 'input window, operand 0, single buffered']
    #allocation3 [shape = 's32[1]{0}', space=sflag, size = 0x4, scoped, tag = 'scoped memory for tpu_custom_call.1']
    #allocation4 [shape = 's32[1]{0}', space=sflag, size = 0x4, scoped, tag = 'scoped memory for tpu_custom_call.1']
    #allocation5 [shape = 'u8[16384]{0}', space=vmem, size = 0x4000, scoped, tag = 'output window, operand 0, single buffered']
    %9 = vsyncpa [#allocation3], 0
    %10 = vsyncpa [#allocation4], 0
    // Predicated region
    $region2: #{tpu_custom_call.1} parent=1 // pred_check
      _
    $region3: #{tpu_custom_call.1} parent=1 // pred_check_branch
      %12 = sbr.rel (0) target = $region5
    $region4: #{tpu_custom_call.1} parent=1 // pred_region
      %s14 = ssub.s32 1280, 1280
      %15 = vsyncadd [#allocation3], %s14
      %s16 = sshll.u32 [#allocation2], 4
      %s17 = int_to_ptr.vmem [resolvable:$true] %s16
      %22 = dma.hbm_to_vmem [thread:$0]  %s0, 1280, %s17, [#allocation3], 256, 256, 16
    $region5: #{tpu_custom_call.1} parent=1 // pred_fallthru
      _
    // Predicated region
    $region6: #{tpu_custom_call.1} parent=1 // pred_check
      _
    $region7: #{tpu_custom_call.1} parent=1 // pred_check_branch
      %24 = sbr.rel (0) target = $region9
    $region8: #{tpu_custom_call.1} parent=1 // pred_region
      _
    $region9: #{tpu_custom_call.1} parent=1 // pred_fallthru
      _
    // Predicated region
    $region10: #{tpu_custom_call.1} parent=1 // pred_check
      _
    $region11: #{tpu_custom_call.1} parent=1 // pred_check_branch
      %26 = sbr.rel (0) target = $region13
    $region12: #{tpu_custom_call.1} parent=1 // pred_region
      _
    $region13: #{tpu_custom_call.1} parent=1 // pred_fallthru
      _
    // Predicated region
    $region14: #{tpu_custom_call.1} parent=1 // pred_check
      _
    $region15: #{tpu_custom_call.1} parent=1 // pred_check_branch
      %28 = sbr.rel (0) target = $region17
    $region16: #{tpu_custom_call.1} parent=1 // pred_region
      _
    $region17: #{tpu_custom_call.1} parent=1 // pred_fallthru
      _
    // Predicated region
    $region18: #{tpu_custom_call.1} parent=1 // pred_check
      _
    $region19: #{tpu_custom_call.1} parent=1 // pred_check_branch
      %30 = sbr.rel (0) target = $region21
    $region20: #{tpu_custom_call.1} parent=1 // pred_region
      %31 = dma.done [#allocation3], 1280
    $region21: #{tpu_custom_call.1} parent=1 // pred_fallthru
      _
    %v33 = vld [vmem:[%s1] sm:$0xf]
    %v34 = vld [vmem:[#allocation2] sm:$0xff]
    %v35 = vld [vmem:[#allocation2 + $0x8] sm:$0xff]
    %v36 = vld [vmem:[#allocation2 + $0x10] sm:$0xff]
    %v37 = vld [vmem:[#allocation2 + $0x18] sm:$0xff]
    %v38 = vld [vmem:[#allocation2 + $0x20] sm:$0xff]
    %v39 = vld [vmem:[#allocation2 + $0x28] sm:$0xff]
    %v40 = vld [vmem:[#allocation2 + $0x30] sm:$0xff]
    %v41 = vld [vmem:[#allocation2 + $0x38] sm:$0xff]
    %v42 = vld [vmem:[#allocation2 + $0x40] sm:$0x33]
    %v43 = vld [vmem:[#allocation2 + $0x48] sm:$0x33]
    %v54 = vunpack.c.l.b16 %v34
    %v55 = vunpack.c.h.b16 %v34
    %v56 = vunpack.c.l.b16 %v35
    %v57 = vunpack.c.h.b16 %v35
    %v58 = vunpack.c.l.b16 %v36
    %v59 = vunpack.c.h.b16 %v36
    %v60 = vunpack.c.l.b16 %v37
    %v61 = vunpack.c.h.b16 %v37
    %v62 = vunpack.c.l.b16 %v38
    %v63 = vunpack.c.h.b16 %v38
    %v64 = vunpack.c.l.b16 %v39
    %v65 = vunpack.c.h.b16 %v39
    %v66 = vunpack.c.l.b16 %v40
    %v67 = vunpack.c.h.b16 %v40
    %v68 = vunpack.c.l.b16 %v41
    %v69 = vunpack.c.h.b16 %v41
    %v70 = vunpack.c.l.b16 %v42
    %v71 = vunpack.c.h.b16 %v42
    %v72 = vunpack.c.l.b16 %v43
    %v73 = vunpack.c.h.b16 %v43
    %v74 = vpack.c.b16 %v58, %v54
    %v75 = vpack.c.b16 %v59, %v55
    %v76 = vpack.c.b16 %v60, %v56
    %v77 = vpack.c.b16 %v61, %v57
    %v78 = vpack.c.b16 %v66, %v62
    %v79 = vpack.c.b16 %v67, %v63
    %v80 = vpack.c.b16 %v68, %v64
    %v81 = vpack.c.b16 %v69, %v65
    %v82 = vpack.c.b16 %v70, %v70
    %v83 = vpack.c.b16 %v71, %v71
    %v84 = vpack.c.b16 %v72, %v72
    %v85 = vpack.c.b16 %v73, %v73
    %vm94 = vcmask 293888
    %v96 = vsel %vm94, %v33, 0
    %vm98 = vcmask 1041408
    %v100 = vsel %vm98, %v82, 0
    %v103 = vsel %vm98, %v83, 0
    %v106 = vsel %vm98, %v84, 0
    %v109 = vsel %vm98, %v85, 0
    %111 = vmatprep.subr.bf16.mxu0 0
    %112 = vmatpush1.bf16.msra.mxu0 0
    %113 = vmatprep.subr.bf16.mxu0 0
    %114 = vmatpush1.bf16.msra.mxu0 0
    %115 = vmatprep.subr.bf16.mxu0 0
    %116 = vmatpush1.bf16.msra.mxu0 0
    %117 = vmatprep.subr.bf16.mxu0 0
    %118 = vmatpush1.bf16.msra.mxu0 0
    %119 = vmatprep.subr.bf16.mxu0 0
    %120 = vmatpush1.bf16.msra.mxu0 0
    %121 = vmatprep.subr.bf16.mxu0 %v103
    %122 = vmatpush1.bf16.msra.mxu0 %v100
    %123 = vmatprep.subr.bf16.mxu0 %v79
    %124 = vmatpush1.bf16.msra.mxu0 %v78
    %125 = vmatprep.subr.bf16.mxu0 %v75
    %126 = vmatpush1.bf16.msra.mxu0 %v74
    %127 = vmatprep.subr.bf16.mxu0 0
    %128 = vmatpush2.bf16.msra.mxu0 0
    %129 = vmatprep.subr.bf16.mxu0 0
    %130 = vmatpush2.bf16.msra.mxu0 0
    %131 = vmatprep.subr.bf16.mxu0 0
    %132 = vmatpush2.bf16.msra.mxu0 0
    %133 = vmatprep.subr.bf16.mxu0 0
    %134 = vmatpush2.bf16.msra.mxu0 0
    %135 = vmatprep.subr.bf16.mxu0 0
    %136 = vmatpush2.bf16.msra.mxu0 0
    %137 = vmatprep.subr.bf16.mxu0 0
    %138 = vmatpush2.bf16.msra.mxu0 0
    %139 = vmatprep.subr.bf16.mxu0 0
    %140 = vmatpush2.bf16.msra.mxu0 0
    %141 = vmatprep.subr.bf16.mxu0 0
    %142 = vmatpush2.bf16.msra.mxu0 0
    %143 = vmatprep.mubr.bf16.mxu0 0
    %144 = vmatmul.mubr.bf16.gmra.mxu0 %v96
    %v145 = vpop.f32.mrf.mxu0
    %v146 = vadd.f32 0.0, %v145
    %v147 = vpop.f32.mrf.mxu0
    %v148 = vadd.f32 0.0, %v147
    %v149 = vpop.f32.mrf.mxu0
    %v150 = vpop.f32.mrf.mxu0
    %151 = vdwg.mxu0
    %152 = vmatprep.subr.bf16.mxu0 0
    %153 = vmatpush1.bf16.msra.mxu0 0
    %154 = vmatprep.subr.bf16.mxu0 0
    %155 = vmatpush1.bf16.msra.mxu0 0
    %156 = vmatprep.subr.bf16.mxu0 0
    %157 = vmatpush1.bf16.msra.mxu0 0
    %158 = vmatprep.subr.bf16.mxu0 0
    %159 = vmatpush1.bf16.msra.mxu0 0
    %160 = vmatprep.subr.bf16.mxu0 0
    %161 = vmatpush1.bf16.msra.mxu0 0
    %162 = vmatprep.subr.bf16.mxu0 %v109
    %163 = vmatpush1.bf16.msra.mxu0 %v106
    %164 = vmatprep.subr.bf16.mxu0 %v81
    %165 = vmatpush1.bf16.msra.mxu0 %v80
    %166 = vmatprep.subr.bf16.mxu0 %v77
    %167 = vmatpush1.bf16.msra.mxu0 %v76
    %168 = vmatprep.subr.bf16.mxu0 0
    %169 = vmatpush2.bf16.msra.mxu0 0
    %170 = vmatprep.subr.bf16.mxu0 0
    %171 = vmatpush2.bf16.msra.mxu0 0
    %172 = vmatprep.subr.bf16.mxu0 0
    %173 = vmatpush2.bf16.msra.mxu0 0
    %174 = vmatprep.subr.bf16.mxu0 0
    %175 = vmatpush2.bf16.msra.mxu0 0
    %176 = vmatprep.subr.bf16.mxu0 0
    %177 = vmatpush2.bf16.msra.mxu0 0
    %178 = vmatprep.subr.bf16.mxu0 0
    %179 = vmatpush2.bf16.msra.mxu0 0
    %180 = vmatprep.subr.bf16.mxu0 0
    %181 = vmatpush2.bf16.msra.mxu0 0
    %182 = vmatprep.subr.bf16.mxu0 0
    %183 = vmatpush2.bf16.msra.mxu0 0
    %184 = vmatprep.mubr.bf16.mxu0 0
    %185 = vmatmul.mubr.bf16.gmra.mxu0 %v96
    %v186 = vpop.f32.mrf.mxu0
    %v187 = vadd.f32 0.0, %v186
    %v188 = vpop.f32.mrf.mxu0
    %v189 = vadd.f32 0.0, %v188
    %v190 = vpop.f32.mrf.mxu0
    %v191 = vpop.f32.mrf.mxu0
    %192 = vdwg.mxu0
    %v193 = vadd.f32 %v146, %v148
    %v194 = vadd.f32 %v193, %v187
    %v195 = vadd.f32 %v194, %v189
    %196 = vadd.xlane.f32.xlu0 %v195
    %v197 = vpop.xlane.xlu0 %196
    %v198 = vmul.f32 %v197, 0.001953125
    %v199 = vsub.f32 %v146, %v198
    %v200 = vsub.f32 %v148, %v198
    %v201 = vsub.f32 %v187, %v198
    %v202 = vsub.f32 %v189, %v198
    %v203 = vmul.f32 %v199, %v199
    %v204 = vmul.f32 %v200, %v200
    %v205 = vmul.f32 %v201, %v201
    %v206 = vmul.f32 %v202, %v202
    %v207 = vadd.f32 %v203, %v204
    %v208 = vadd.f32 %v207, %v205
    %v209 = vadd.f32 %v208, %v206
    %210 = vadd.xlane.f32.xlu0 %v209
    %v211 = vpop.xlane.xlu0 %210
    %v212 = vmul.f32 %v211, 0.001953125
    %v213 = vld [vmem:[%s2] sm:$0xff]
    %v214 = vadd.f32 %v212, 1e-05
    %v215 = vrsqrt.pop %v214
    %v216 = vmul.f32 %v213, %v215
    %v217 = vld [vmem:[%s3] sm:$0xff]
    %v218 = vmul.f32 %v198, %v216
    %v219 = vsub.f32 %v217, %v218
    %221 = vset.pattern.permute.xlu0 0
    %222 = vperm.xlu0 %221, %v216
    %v223 = vpop.permute.xlu0 %222
    %v225 = vmul.f32 %v146, %v223
    %v226 = vmul.f32 %v148, %v223
    %v227 = vmul.f32 %v187, %v223
    %v228 = vmul.f32 %v189, %v223
    %230 = vset.pattern.permute.xlu0 0
    %231 = vperm.xlu0 %230, %v219
    %v232 = vpop.permute.xlu0 %231
    %v234 = vadd.f32 %v225, %v232
    %v235 = vadd.f32 %v226, %v232
    %v236 = vadd.f32 %v227, %v232
    %v237 = vadd.f32 %v228, %v232
    %v238 = vmax.f32 %v234, 0.0
    %v239 = vmax.f32 %v235, 0.0
    %v240 = vmax.f32 %v236, 0.0
    %v241 = vmax.f32 %v237, 0.0
    %242 = vst [vmem:[#allocation5] sm:$0xff] %v238
    %243 = vst [vmem:[#allocation5 + $0x8] sm:$0xff] %v239
    %244 = vst [vmem:[#allocation5 + $0x10] sm:$0xff] %v240
    %245 = vst [vmem:[#allocation5 + $0x18] sm:$0xff] %v241
    // Predicated region
    $region22: #{tpu_custom_call.1} parent=1 // pred_check
      _
    $region23: #{tpu_custom_call.1} parent=1 // pred_check_branch
      %247 = sbr.rel (0) target = $region25
    $region24: #{tpu_custom_call.1} parent=1 // pred_region
      %s249 = ssub.s32 512, 512
      %250 = vsyncadd [#allocation4], %s249
      %s252 = sshll.u32 [#allocation5], 4
      %s253 = int_to_ptr.vmem [resolvable:$true] %s252
      %255 = dma.vmem_to_hbm [thread:$0]  %s253, 512, %s4, [#allocation4]
    $region25: #{tpu_custom_call.1} parent=1 // pred_fallthru
      _
    // Predicated region
    $region26: #{tpu_custom_call.1} parent=1 // pred_check
      _
    $region27: #{tpu_custom_call.1} parent=1 // pred_check_branch
      %257 = sbr.rel (0) target = $region29
    $region28: #{tpu_custom_call.1} parent=1 // pred_region
      %258 = dma.done [#allocation4], 512
    $region29: #{tpu_custom_call.1} parent=1 // pred_fallthru
      _
    %259 = vsyncpa [#allocation3], 1
    %260 = vsyncpa [#allocation4], 1

</llo_original>
